<compile_context>
chip_gen: v7x
topology: tpu7x:2x2x1
jax: 0.10.0
libtpu: 0.0.40
codegen_flags: <defaults>
</compile_context>

<pallas_src>
import math

import jax
import jax.numpy as jnp
from jax.experimental import pallas as pl
from jax.experimental.pallas import tpu as pltpu


def gate_kernel(x_ref, w_ref, o_ref):
    # x_ref: (1, te_dim)  task embedding row
    # w_ref: (expert_num, te_dim)  PyTorch nn.Linear weight layout (no transpose)
    # o_ref: (expert_num, 1)  softmax probabilities (one column)
    prod = w_ref[...] * x_ref[...]                    # VPU: broadcast x over sublanes
    logits = jnp.sum(prod, axis=-1, keepdims=True)    # XLU lane reduce -> (E, 1)
    # numerically-stable softmax over the expert (sublane) axis == torch softmax(dim=0)
    m = jnp.max(logits, axis=0, keepdims=True)        # (1, 1)
    e = jnp.exp(logits - m)                           # EUP
    denom = jnp.sum(e, axis=0, keepdims=True)         # (1, 1)
    o_ref[...] = (e * pl.reciprocal(denom, approx=False)).astype(o_ref.dtype)


def gate_forward(task_em, weight):
    """task_em: (te_dim,) f32; weight: (expert_num, te_dim) f32 (PyTorch layout)
    -> (expert_num,) f32 softmax gate probabilities."""
    te_dim = task_em.shape[0]
    expert_num = weight.shape[0]
    x2d = task_em.reshape(1, te_dim)

    out = pl.pallas_call(
        gate_kernel,
        out_shape=jax.ShapeDtypeStruct((expert_num, 1), jnp.float32),
        in_specs=[
            pl.BlockSpec(memory_space=pltpu.MemorySpace.VMEM),
            pl.BlockSpec(memory_space=pltpu.MemorySpace.VMEM),
        ],
        out_specs=pl.BlockSpec(memory_space=pltpu.MemorySpace.VMEM),
    )(x2d, weight)
    return out.reshape(expert_num)


if __name__ == "__main__":
    # Small, module-consistent sizes: task_embedding_dim=32, expert_num=8.
    te_dim = 32
    expert_num = 8

    key = jax.random.PRNGKey(0)
    k_w, k_x = jax.random.split(key)

    # Deterministic init mimicking nn.Linear's default U(-1/sqrt(in), 1/sqrt(in)).
    bound = 1.0 / math.sqrt(te_dim)
    # PyTorch weight shape (expert_num, te_dim) — used directly, no transpose.
    weight = jax.random.uniform(
        k_w, (expert_num, te_dim), minval=-bound, maxval=bound, dtype=jnp.float32
    )
    task_em = jax.random.normal(k_x, (te_dim,), dtype=jnp.float32)

    y = gate_forward(task_em, weight)
    jax.block_until_ready(y)

    # Reference check (plain JAX) for correctness.
    ref = jax.nn.softmax(task_em @ weight.T, axis=0)
    assert y.shape == (expert_num,)
    assert jnp.allclose(y, ref, atol=1e-6, rtol=1e-6)

    print("KERNEL_OK")
</pallas_src>

<mosaic_0001>
module attributes {stable_mosaic.version = 11 : i64} {
  func.func @gate_kernel(%arg0: memref<1x32xf32, #tpu.memory_space<vmem>>, %arg1: memref<8x32xf32, #tpu.memory_space<vmem>>, %arg2: memref<8x1xf32, #tpu.memory_space<vmem>>) attributes {dimension_semantics = [], scalar_prefetch = 0 : i64, scratch_operands = 0 : i64, tpu.core_type = #tpu.core_type<tc>} {
    %c0 = arith.constant 0 : index
    %c0_0 = arith.constant 0 : index
    %0 = vector.load %arg1[%c0, %c0_0] : memref<8x32xf32, #tpu.memory_space<vmem>>, vector<8x32xf32>
    %c0_1 = arith.constant 0 : index
    %c0_2 = arith.constant 0 : index
    %1 = vector.load %arg0[%c0_1, %c0_2] : memref<1x32xf32, #tpu.memory_space<vmem>>, vector<1x32xf32>
    %2 = vector.broadcast %1 : vector<1x32xf32> to vector<8x32xf32>
    %3 = arith.mulf %0, %2 : vector<8x32xf32>
    %cst = arith.constant dense<0.000000e+00> : vector<8xf32>
    %4 = vector.multi_reduction <add>, %3, %cst [1] : vector<8x32xf32> to vector<8xf32>
    %5 = vector.shape_cast %4 : vector<8xf32> to vector<8x1xf32>
    %cst_3 = arith.constant dense<0xFF800000> : vector<1xf32>
    %6 = vector.multi_reduction <maximumf>, %5, %cst_3 [0] : vector<8x1xf32> to vector<1xf32>
    %7 = vector.shape_cast %6 : vector<1xf32> to vector<1x1xf32>
    %8 = vector.broadcast %7 : vector<1x1xf32> to vector<8x1xf32>
    %9 = arith.subf %5, %8 : vector<8x1xf32>
    %10 = math.exp %9 : vector<8x1xf32>
    %cst_4 = arith.constant dense<0.000000e+00> : vector<1xf32>
    %11 = vector.multi_reduction <add>, %10, %cst_4 [0] : vector<8x1xf32> to vector<1xf32>
    %12 = vector.shape_cast %11 : vector<1xf32> to vector<1x1xf32>
    %13 = tpu.reciprocal %12 : vector<1x1xf32> -> vector<1x1xf32>
    %14 = vector.broadcast %13 : vector<1x1xf32> to vector<8x1xf32>
    %15 = arith.mulf %10, %14 : vector<8x1xf32>
    %c0_5 = arith.constant 0 : index
    %c0_6 = arith.constant 0 : index
    %16 = vector.load %arg2[%c0_5, %c0_6] : memref<8x1xf32, #tpu.memory_space<vmem>>, vector<8x1xf32>
    tpu.vector_store %arg2[%c0_5, %c0_6], %15 {strides = array<i32>} : memref<8x1xf32, #tpu.memory_space<vmem>>, vector<8x1xf32>,
    return
  }
}

</mosaic_0001>

<llo_original>
// kernel: tpu_custom_call.1
$region0: #{tpu_custom_call.1}
  #allocation0 [shape = 'u32[]', space=smem, size = 0x4, offset = 0x4, fixed_abs, tag = 'smem constant byte address 0x4 - core index']
  #allocation1 [shape = 'u32[144,128]{1,0:T(1,128)}', space=vmem, size = 0x12000, scoped, tag = 'internal scratch']
  %s0 = inlined_call_operand.hbm [shape: f32[1,32], index: 0, kind: input, shape index: {}]
  %s1 = inlined_call_operand.hbm [shape: f32[8,32], index: 1, kind: input, shape index: {}]
  %s2 = inlined_call_operand.vmem [shape: f32[8,1], index: 2, kind: output, shape index: {}]
  %s3 = sld [smem:[#allocation0]]
  $region26: #{tpu_custom_call.1} parent=0
    _
  %s5 = ssub.s32 1, %s3
  %s6 = scalar_select 0, %s5, %s3
  $region1: #{tpu_custom_call.1} parent=0
    #allocation2 [shape = 'u8[512]{0}', space=vmem, size = 0x400, scoped, tag = 'input window, operand 0, single buffered']
    #allocation3 [shape = 's32[1]{0}', space=sflag, size = 0x4, scoped, tag = 'scoped memory for tpu_custom_call.1']
    #allocation4 [shape = 'u8[4096]{0}', space=vmem, size = 0x1000, scoped, tag = 'input window, operand 1, single buffered']
    #allocation5 [shape = 's32[1]{0}', space=sflag, size = 0x4, scoped, tag = 'scoped memory for tpu_custom_call.1']
    %7 = vsyncpa [#allocation3], 0
    %8 = vsyncpa [#allocation5], 0
    // Predicated region
    $region2: #{tpu_custom_call.1} parent=1 // pred_check
      _
    $region3: #{tpu_custom_call.1} parent=1 // pred_check_branch
      %10 = sbr.rel (0) target = $region5
    $region4: #{tpu_custom_call.1} parent=1 // pred_region
      %s12 = ssub.s32 16, 16
      %13 = vsyncadd [#allocation3], %s12
      %s15 = sshll.u32 [#allocation2], 4
      %s16 = int_to_ptr.vmem [resolvable:$true] %s15
      %18 = dma.hbm_to_vmem [thread:$0]  %s0, 16, %s16, [#allocation3]
    $region5: #{tpu_custom_call.1} parent=1 // pred_fallthru
      _
    // Predicated region
    $region6: #{tpu_custom_call.1} parent=1 // pred_check
      _
    $region7: #{tpu_custom_call.1} parent=1 // pred_check_branch
      %20 = sbr.rel (0) target = $region9
    $region8: #{tpu_custom_call.1} parent=1 // pred_region
      %s22 = ssub.s32 128, 128
      %23 = vsyncadd [#allocation5], %s22
      %s25 = sshll.u32 [#allocation4], 4
      %s26 = int_to_ptr.vmem [resolvable:$true] %s25
      %28 = dma.hbm_to_vmem [thread:$0]  %s1, 128, %s26, [#allocation5]
    $region9: #{tpu_custom_call.1} parent=1 // pred_fallthru
      _
    // Predicated region
    $region10: #{tpu_custom_call.1} parent=1 // pred_check
      _
    $region11: #{tpu_custom_call.1} parent=1 // pred_check_branch
      %30 = sbr.rel (0) target = $region13
    $region12: #{tpu_custom_call.1} parent=1 // pred_region
      %31 = dma.done [#allocation3], 16
    $region13: #{tpu_custom_call.1} parent=1 // pred_fallthru
      _
    // Predicated region
    $region14: #{tpu_custom_call.1} parent=1 // pred_check
      _
    $region15: #{tpu_custom_call.1} parent=1 // pred_check_branch
      %33 = sbr.rel (0) target = $region17
    $region16: #{tpu_custom_call.1} parent=1 // pred_region
      %34 = dma.done [#allocation5], 128
    $region17: #{tpu_custom_call.1} parent=1 // pred_fallthru
      _
    %v35 = vld [vmem:[#allocation4] sm:$0xff]
    %v36 = vld [vmem:[#allocation2] sm:$0x1]
    %v38 = vlaneseq
    %v39 = vshrl.u32 %v38, 7
    %v40 = vsub.s32 0, %v39
    %v41 = vrot.slane %v36, %v40
    %v43 = vmul.f32 %v35, %v41
    %vm44 = vcmask 261120
    %v45 = vsel %vm44, %v43, 0.0
    %46 = vadd.xlane.f32.xlu0 %v45
    %v47 = vpop.xlane.xlu0 %46
    %v48 = vrot.slane %v47, 4
    %v49 = vmax.f32 %v47, %v48
    %v50 = vrot.slane %v49, 2
    %v51 = vmax.f32 %v49, %v50
    %v52 = vrot.slane %v51, 1
    %v53 = vmax.f32 %v51, %v52
    %v54 = vsub.f32 %v47, %v53
    %v55 = vmul.f32 %v54, 1.442695
    %v56 = vpow.pop %v55
    %v57 = vrot.slane %v56, 4
    %v58 = vadd.f32 %v56, %v57
    %v59 = vrot.slane %v58, 2
    %v60 = vadd.f32 %v58, %v59
    %v61 = vrot.slane %v60, 1
    %v62 = vadd.f32 %v60, %v61
    %v63 = vrcp.pop %v62
    %v64 = vmul.f32 %v56, %v63
    %vm65 = vcmask 7168
    %66 = vst.msk [vmem:[%s2] sm:$0xff] %vm65, %v64
    // Predicated region
    $region18: #{tpu_custom_call.1} parent=1 // pred_check
      _
    $region19: #{tpu_custom_call.1} parent=1 // pred_check_branch
      %68 = sbr.rel (0) target = $region21
    $region20: #{tpu_custom_call.1} parent=1 // pred_region
      _
    $region21: #{tpu_custom_call.1} parent=1 // pred_fallthru
      _
    // Predicated region
    $region22: #{tpu_custom_call.1} parent=1 // pred_check
      _
    $region23: #{tpu_custom_call.1} parent=1 // pred_check_branch
      %70 = sbr.rel (0) target = $region25
    $region24: #{tpu_custom_call.1} parent=1 // pred_region
      _
    $region25: #{tpu_custom_call.1} parent=1 // pred_fallthru
      _
    %71 = vsyncpa [#allocation3], 1
    %72 = vsyncpa [#allocation5], 1

</llo_original>
